<compile_context>
chip_gen: v7x
topology: tpu7x:2x2x1
jax: 0.10.0
libtpu: 0.0.40
codegen_flags: <defaults>
</compile_context>

<pallas_src>
import math

import jax
import jax.numpy as jnp
from jax.experimental import pallas as pl
from jax.experimental.pallas import tpu as pltpu


def posemb_linear_kernel(x_ref, b_ref, shift_ref, wt_ref, bias_ref, o_ref):
    # x_ref:    (tm, in_pad)          input rows (zero-padded channels)
    # b_ref:    (in_pad, out_pad)     frequency matrix, scale folded in (f32)
    # shift_ref:(1, out_pad)          0.0 on sin lanes, pi/2 on cos lanes
    # wt_ref:   (out_pad, out_pad)    W.T, zero-padded (f32 or bf16)
    # bias_ref: (1, out_pad)          bias, zero-padded (f32)
    # Phase matmul kept in f32: trig needs the precision.
    phase = jnp.dot(x_ref[...], b_ref[...], preferred_element_type=jnp.float32)
    # cos(p) = sin(p + pi/2): one EUP transcendental per lane instead of two + select.
    feat = jnp.sin(phase + shift_ref[...])
    # Second matmul dtype follows Wt (bf16 on v6e/v7x if desired), f32 accumulation.
    out = jnp.dot(feat.astype(wt_ref.dtype), wt_ref[...],
                  preferred_element_type=jnp.float32) + bias_ref[...]
    o_ref[...] = out.astype(o_ref.dtype)


def _round_up(a, m):
    return ((a + m - 1) // m) * m


def posemb_linear(x, emb, W, bias, *, scale=1.0, tm=512,
                  matmul_dtype=jnp.float32):
    """x: (..., in_dim) float32. Returns (..., out_dim) float32."""
    in_dim = x.shape[-1]
    half = emb.shape[0]
    out_dim = W.shape[0]
    assert out_dim == 2 * half * in_dim

    sizes = x.shape[:-1]
    x_flat = x.reshape(-1, in_dim).astype(jnp.float32)
    n = x_flat.shape[0]

    # Row tile: as large as requested, but keep >= 2 grid steps when N allows
    # (so both TensorCores on v7x / megacore get work), and a multiple of 8.
    tm_eff = min(tm, max(8, _round_up(n, 8)))
    if n > 8:
        tm_eff = min(tm_eff, _round_up((n + 1) // 2, 8))
    tm_eff = _round_up(tm_eff, 8)
    n_pad = _round_up(n, tm_eff)

    # Pad contraction dim to a multiple of 8 and output lane dim to a multiple
    # of 128 (lane-dense stores + full MXU N). Padded rows/cols are zero, so the
    # math is unchanged; padding is sliced off below.
    in_pad = _round_up(in_dim, 8)
    out_pad = _round_up(out_dim, 128)

    x_p = jnp.zeros((n_pad, in_pad), jnp.float32).at[:n, :in_dim].set(x_flat)

    # B[i, i*2*half + j]        = scale * emb[j]   (sin lanes)
    # B[i, i*2*half + half + j] = scale * emb[j]   (cos lanes)
    col = jnp.arange(out_dim)
    row_of_col = col // (2 * half)              # input channel owning this lane
    j_of_col = (col % (2 * half)) % half        # frequency index
    B = jnp.zeros((in_pad, out_pad), jnp.float32)
    B = B.at[row_of_col, col].set(jnp.float32(scale) * emb[j_of_col])

    # Per-lane phase offset: 0 for sin lanes, pi/2 for cos lanes; 0 on padded lanes.
    is_cos = (col % (2 * half)) >= half
    shift = jnp.zeros((1, out_pad), jnp.float32)
    shift = shift.at[0, col].set(jnp.where(is_cos, jnp.float32(math.pi / 2.0), 0.0))

    Wt = jnp.zeros((out_pad, out_pad), matmul_dtype)
    Wt = Wt.at[:out_dim, :out_dim].set(W.T.astype(matmul_dtype))
    b2 = jnp.zeros((1, out_pad), jnp.float32).at[0, :out_dim].set(
        bias.astype(jnp.float32))

    grid = (n_pad // tm_eff,)
    # NOTE: B/shift/Wt/bias are grid-invariant; at these sizes their double-buffered
    # VMEM cost is tiny, so no pipeline_mode override is needed.
    out = pl.pallas_call(
        posemb_linear_kernel,
        out_shape=jax.ShapeDtypeStruct((n_pad, out_pad), jnp.float32),
        grid_spec=pltpu.PrefetchScalarGridSpec(
            num_scalar_prefetch=0,
            grid=grid,
            in_specs=[
                pl.BlockSpec((tm_eff, in_pad), lambda i: (i, 0)),
                pl.BlockSpec((in_pad, out_pad), lambda i: (0, 0)),
                pl.BlockSpec((1, out_pad), lambda i: (0, 0)),
                pl.BlockSpec((out_pad, out_pad), lambda i: (0, 0)),
                pl.BlockSpec((1, out_pad), lambda i: (0, 0)),
            ],
            out_specs=pl.BlockSpec((tm_eff, out_pad), lambda i: (i, 0)),
        ),
        compiler_params=pltpu.CompilerParams(
            dimension_semantics=("parallel",)),
    )(x_p, B, shift, Wt, b2)

    return out[:n, :out_dim].reshape(*sizes, out_dim)


def ref_forward(x, emb, W, bias, scale):
    sizes = x.shape
    p = scale * x[..., None] * emb[None, :]                     # (..., in_dim, half)
    feat = jnp.concatenate([jnp.sin(p), jnp.cos(p)], axis=-1)   # (..., in_dim, 2*half)
    feat = feat.reshape(*sizes[:-1], W.shape[0])
    return feat @ W.T + bias


if __name__ == "__main__":
    in_dim, out_dim, scale = 3, 48, 1.0
    assert out_dim % (2 * in_dim) == 0
    half = out_dim // 2 // in_dim

    # Deterministic parameter init (matches module __init__ shapes).
    e = math.log(10000.0) / (half - 1)
    emb = jnp.exp(jnp.arange(half, dtype=jnp.float32) * -e)

    key = jax.random.PRNGKey(0)
    kx, kw = jax.random.split(key)
    # xavier_uniform_: bound = sqrt(6 / (fan_in + fan_out))
    bound = math.sqrt(6.0 / (out_dim + out_dim))
    W = jax.random.uniform(kw, (out_dim, out_dim), jnp.float32, -bound, bound)
    bias = jnp.zeros((out_dim,), jnp.float32)

    # Input: (batch=2, seq=8, in_dim=3)
    x = jax.random.normal(kx, (2, 8, in_dim), jnp.float32)

    out = posemb_linear(x, emb, W, bias, scale=scale)
    out = jax.block_until_ready(out)

    ref = ref_forward(x, emb, W, bias, scale)
    assert out.shape == (2, 8, out_dim)
    assert jnp.allclose(out, ref, atol=1e-3, rtol=1e-3), "mismatch vs reference"

    print("KERNEL_OK")
</pallas_src>

<mosaic_0001>
module attributes {stable_mosaic.version = 11 : i64} {
  func.func @posemb_linear_kernel(%arg0: i32, %arg1: memref<8x8xf32, #tpu.memory_space<vmem>>, %arg2: memref<8x128xf32, #tpu.memory_space<vmem>>, %arg3: memref<1x128xf32, #tpu.memory_space<vmem>>, %arg4: memref<128x128xf32, #tpu.memory_space<vmem>>, %arg5: memref<1x128xf32, #tpu.memory_space<vmem>>, %arg6: memref<8x128xf32, #tpu.memory_space<vmem>>) attributes {dimension_semantics = [#tpu.dimension_semantics<parallel>], iteration_bounds = array<i64: 2>, scalar_prefetch = 0 : i64, scratch_operands = 0 : i64, tpu.core_type = #tpu.core_type<tc>, window_params = [{transform_indices = @transform_0, window_bounds = array<i64: 8, 8>}, {pipeline_mode = #tpu.pipeline_mode<synchronous>, transform_indices = @transform_1, window_bounds = array<i64: 8, 128>}, {pipeline_mode = #tpu.pipeline_mode<synchronous>, transform_indices = @transform_2, window_bounds = array<i64: 1, 128>}, {pipeline_mode = #tpu.pipeline_mode<synchronous>, transform_indices = @transform_3, window_bounds = array<i64: 128, 128>}, {pipeline_mode = #tpu.pipeline_mode<synchronous>, transform_indices = @transform_4, window_bounds = array<i64: 1, 128>}, {transform_indices = @transform_5, window_bounds = array<i64: 8, 128>}]} {
    %c0 = arith.constant 0 : index
    %c0_0 = arith.constant 0 : index
    %0 = vector.load %arg1[%c0, %c0_0] : memref<8x8xf32, #tpu.memory_space<vmem>>, vector<8x8xf32>
    %c0_1 = arith.constant 0 : index
    %c0_2 = arith.constant 0 : index
    %1 = vector.load %arg2[%c0_1, %c0_2] : memref<8x128xf32, #tpu.memory_space<vmem>>, vector<8x128xf32>
    %cst = arith.constant dense<0.000000e+00> : vector<8x128xf32>
    %2 = tpu.matmul %0, %1, %cst {dimension_numbers = #tpu.dot_dimension_numbers<[1], [0], [0], [1], [0, 0, 1, 1], [], []>} : vector<8x8xf32>, vector<8x128xf32>, vector<8x128xf32> -> vector<8x128xf32>
    %c0_3 = arith.constant 0 : index
    %c0_4 = arith.constant 0 : index
    %3 = vector.load %arg3[%c0_3, %c0_4] : memref<1x128xf32, #tpu.memory_space<vmem>>, vector<1x128xf32>
    %4 = vector.broadcast %3 : vector<1x128xf32> to vector<8x128xf32>
    %5 = arith.addf %2, %4 : vector<8x128xf32>
    %6 = math.sin %5 : vector<8x128xf32>
    %c0_5 = arith.constant 0 : index
    %c0_6 = arith.constant 0 : index
    %7 = vector.load %arg4[%c0_5, %c0_6] : memref<128x128xf32, #tpu.memory_space<vmem>>, vector<128x128xf32>
    %cst_7 = arith.constant dense<0.000000e+00> : vector<8x128xf32>
    %8 = tpu.matmul %6, %7, %cst_7 {dimension_numbers = #tpu.dot_dimension_numbers<[1], [0], [0], [1], [0, 0, 1, 1], [], []>} : vector<8x128xf32>, vector<128x128xf32>, vector<8x128xf32> -> vector<8x128xf32>
    %c0_8 = arith.constant 0 : index
    %c0_9 = arith.constant 0 : index
    %9 = vector.load %arg5[%c0_8, %c0_9] : memref<1x128xf32, #tpu.memory_space<vmem>>, vector<1x128xf32>
    %10 = vector.broadcast %9 : vector<1x128xf32> to vector<8x128xf32>
    %11 = arith.addf %8, %10 : vector<8x128xf32>
    %c0_10 = arith.constant 0 : index
    %c0_11 = arith.constant 0 : index
    %12 = vector.load %arg6[%c0_10, %c0_11] : memref<8x128xf32, #tpu.memory_space<vmem>>, vector<8x128xf32>
    tpu.vector_store %arg6[%c0_10, %c0_11], %11 {strides = array<i32>} : memref<8x128xf32, #tpu.memory_space<vmem>>, vector<8x128xf32>,
    return
  }
  func.func @transform_0(%arg0: i32) -> (i32, i32) {
    %c0_i32 = arith.constant 0 : i32
    %c0_i32_0 = arith.constant 0 : i32
    return %arg0, %c0_i32 : i32, i32
  }
  func.func @transform_1(%arg0: i32) -> (i32, i32) {
    %c0_i32 = arith.constant 0 : i32
    %c0_i32_0 = arith.constant 0 : i32
    %c0_i32_1 = arith.constant 0 : i32
    return %c0_i32, %c0_i32_0 : i32, i32
  }
  func.func @transform_2(%arg0: i32) -> (i32, i32) {
    %c0_i32 = arith.constant 0 : i32
    %c0_i32_0 = arith.constant 0 : i32
    %c0_i32_1 = arith.constant 0 : i32
    return %c0_i32, %c0_i32_0 : i32, i32
  }
  func.func @transform_3(%arg0: i32) -> (i32, i32) {
    %c0_i32 = arith.constant 0 : i32
    %c0_i32_0 = arith.constant 0 : i32
    %c0_i32_1 = arith.constant 0 : i32
    return %c0_i32, %c0_i32_0 : i32, i32
  }
  func.func @transform_4(%arg0: i32) -> (i32, i32) {
    %c0_i32 = arith.constant 0 : i32
    %c0_i32_0 = arith.constant 0 : i32
    %c0_i32_1 = arith.constant 0 : i32
    return %c0_i32, %c0_i32_0 : i32, i32
  }
  func.func @transform_5(%arg0: i32) -> (i32, i32) {
    %c0_i32 = arith.constant 0 : i32
    %c0_i32_0 = arith.constant 0 : i32
    return %arg0, %c0_i32 : i32, i32
  }
}

</mosaic_0001>

<llo_original>
// kernel: tpu_custom_call.1
$region0: #{tpu_custom_call.1}
  #allocation0 [shape = 'u32[]', space=smem, size = 0x4, offset = 0x4, fixed_abs, tag = 'smem constant byte address 0x4 - core index']
  #allocation1 [shape = 'u32[144,128]{1,0:T(1,128)}', space=vmem, size = 0x12000, scoped, tag = 'internal scratch']
  %s0 = inlined_call_operand.vmem [shape: f32[16,8], index: 0, kind: input, shape index: {}]
  %s1 = inlined_call_operand.vmem [shape: f32[8,128], index: 1, kind: input, shape index: {}]
  %s2 = inlined_call_operand.vmem [shape: f32[1,128], index: 2, kind: input, shape index: {}]
  %s3 = inlined_call_operand.hbm [shape: f32[128,128], index: 3, kind: input, shape index: {}]
  %s4 = inlined_call_operand.vmem [shape: f32[1,128], index: 4, kind: input, shape index: {}]
  %s5 = inlined_call_operand.hbm [shape: f32[16,128], index: 5, kind: output, shape index: {}]
  %s6 = sld [smem:[#allocation0]]
  $region57: #{tpu_custom_call.1} parent=0
    _
  %s8 = ssub.s32 1, %s6
  %s9 = scalar_select 0, %s8, %s6
  $region1: #{tpu_custom_call.1} parent=0
    #allocation2 [shape = 'u8[65536]{0}', space=vmem, size = 0x10000, scoped, tag = 'input window, operand 3, single buffered']
    #allocation3 [shape = 's32[2]{0}', space=sflag, size = 0x8, scoped, tag = 'scoped memory for tpu_custom_call.1']
    #allocation4 [shape = 's32[2]{0}', space=sflag, size = 0x8, scoped, tag = 'scoped memory for tpu_custom_call.1']
    #allocation5 [shape = 'u8[8192]{0}', space=vmem, size = 0x2000, scoped, tag = 'output window, operand 0']
    %10 = vsyncpa [#allocation3], 0
    %11 = vsyncpa [#allocation4], 0
    %s12 = scalar_lea.sflag [#allocation4], 1
    %13 = vsyncpa %s12, 0
    loop: start=0, step=1, limit=4
    $region2: #{tpu_custom_call.1} parent=1 // loop_pre_header
      _
    $region3: #{tpu_custom_call.1} parent=1 // loop_header
      %s15 = sphi 0, %s19
      %p16 = scmp.ge.s32.totalorder %s15, 4
      %s25 = sphi 0, %s27
      %s28 = sphi 0, %s25
      %s29 = sphi 0, %s28
      %s45 = sphi 0, %s29
      %s49 = sphi 0, %s49
      %s51 = sphi 0, %s49
      %s52 = sphi 0, %s51
      %s66 = sphi 0, %s52
      %s70 = sphi 0, %s70
      %s72 = sphi 0, %s70
      %s73 = sphi 0, %s72
      %s87 = sphi 0, %s73
      %s91 = sphi 0, %s91
      %s93 = sphi 0, %s91
      %s94 = sphi 0, %s93
      %s108 = sphi 0, %s94
      %s112 = sphi 0, %s112
      %s114 = sphi 0, %s112
      %s115 = sphi 0, %s114
      %s129 = sphi 0, %s115
      %s135 = sphi 0, %s137
      %s138 = sphi 0, %s135
      %s139 = sphi 0, %s138
      %s155 = sphi 0, %s139
    $region4: #{tpu_custom_call.1} parent=1 // loop_header_branch
      %18 = sbr.rel (%p16) target = $region8
    $region5: #{tpu_custom_call.1} parent=1 // loop_body
      %s20 = ssub.s32 %s15, 1
      %s21 = ssub.s32 %s15, 2
      %s22 = sadd.s32 %s15, 1
      %s23 = ssub.s32 %s15, %s22
      %p24 = scmp.eq.s32.totalorder %s23, 0
      %s26 = sadd.s32 %s25, 1
      %s27 = scalar_select %p24, %s25, %s26
      %p30 = pneg %p24
      %p31 = scmp.eq.s32.totalorder %s15, 1
      %p32 = por %p30, %p31
      %p33 = scmp.ne.s32.totalorder %s25, %s28
      %p34 = scmp.eq.s32.totalorder %s15, 0
      %p35 = por %p33, %p34
      %p36 = scmp.ne.s32.totalorder %s25, %s28
      %p37 = scmp.eq.s32.totalorder %s20, 1
      %p38 = por %p36, %p37
      %p39 = scmp.ne.s32.totalorder %s28, %s29
      %p40 = scmp.eq.s32.totalorder %s20, 0
      %p41 = por %p39, %p40
      %p42 = scmp.ne.s32.totalorder %s28, %s29
      %p43 = scmp.eq.s32.totalorder %s21, 1
      %p44 = por %p42, %p43
      %p46 = scmp.ne.s32.totalorder %s29, %s45
      %p47 = scmp.eq.s32.totalorder %s21, 0
      %p48 = por %p46, %p47
      %s50 = sadd.s32 %s49, 1
      %p53 = scmp.eq.s32.totalorder %s15, 1
      %p54 = scmp.ne.s32.totalorder %s49, %s51
      %p55 = scmp.eq.s32.totalorder %s15, 0
      %p56 = por %p54, %p55
      %p57 = scmp.ne.s32.totalorder %s49, %s51
      %p58 = scmp.eq.s32.totalorder %s20, 1
      %p59 = por %p57, %p58
      %p60 = scmp.ne.s32.totalorder %s51, %s52
      %p61 = scmp.eq.s32.totalorder %s20, 0
      %p62 = por %p60, %p61
      %p63 = scmp.ne.s32.totalorder %s51, %s52
      %p64 = scmp.eq.s32.totalorder %s21, 1
      %p65 = por %p63, %p64
      %p67 = scmp.ne.s32.totalorder %s52, %s66
      %p68 = scmp.eq.s32.totalorder %s21, 0
      %p69 = por %p67, %p68
      %s71 = sadd.s32 %s70, 1
      %p74 = scmp.eq.s32.totalorder %s15, 1
      %p75 = scmp.ne.s32.totalorder %s70, %s72
      %p76 = scmp.eq.s32.totalorder %s15, 0
      %p77 = por %p75, %p76
      %p78 = scmp.ne.s32.totalorder %s70, %s72
      %p79 = scmp.eq.s32.totalorder %s20, 1
      %p80 = por %p78, %p79
      %p81 = scmp.ne.s32.totalorder %s72, %s73
      %p82 = scmp.eq.s32.totalorder %s20, 0
      %p83 = por %p81, %p82
      %p84 = scmp.ne.s32.totalorder %s72, %s73
      %p85 = scmp.eq.s32.totalorder %s21, 1
      %p86 = por %p84, %p85
      %p88 = scmp.ne.s32.totalorder %s73, %s87
      %p89 = scmp.eq.s32.totalorder %s21, 0
      %p90 = por %p88, %p89
      %s92 = sadd.s32 %s91, 1
      %p95 = scmp.eq.s32.totalorder %s15, 1
      %p96 = scmp.ne.s32.totalorder %s91, %s93
      %p97 = scmp.eq.s32.totalorder %s15, 0
      %p98 = por %p96, %p97
      %p99 = scmp.ne.s32.totalorder %s91, %s93
      %p100 = scmp.eq.s32.totalorder %s20, 1
      %p101 = por %p99, %p100
      %p102 = scmp.ne.s32.totalorder %s93, %s94
      %p103 = scmp.eq.s32.totalorder %s20, 0
      %p104 = por %p102, %p103
      %p105 = scmp.ne.s32.totalorder %s93, %s94
      %p106 = scmp.eq.s32.totalorder %s21, 1
      %p107 = por %p105, %p106
      %p109 = scmp.ne.s32.totalorder %s94, %s108
      %p110 = scmp.eq.s32.totalorder %s21, 0
      %p111 = por %p109, %p110
      %s113 = sadd.s32 %s112, 1
      %p116 = scmp.eq.s32.totalorder %s15, 1
      %p117 = scmp.ne.s32.totalorder %s112, %s114
      %p118 = scmp.eq.s32.totalorder %s15, 0
      %p119 = por %p117, %p118
      %p120 = scmp.ne.s32.totalorder %s112, %s114
      %p121 = scmp.eq.s32.totalorder %s20, 1
      %p122 = por %p120, %p121
      %p123 = scmp.ne.s32.totalorder %s114, %s115
      %p124 = scmp.eq.s32.totalorder %s20, 0
      %p125 = por %p123, %p124
      %p126 = scmp.ne.s32.totalorder %s114, %s115
      %p127 = scmp.eq.s32.totalorder %s21, 1
      %p128 = por %p126, %p127
      %p130 = scmp.ne.s32.totalorder %s115, %s129
      %p131 = scmp.eq.s32.totalorder %s21, 0
      %p132 = por %p130, %p131
      %s133 = ssub.s32 %s15, %s22
      %p134 = scmp.eq.s32.totalorder %s133, 0
      %s136 = sadd.s32 %s135, 1
      %s137 = scalar_select %p134, %s135, %s136
      %p140 = pneg %p134
      %p141 = scmp.eq.s32.totalorder %s15, 1
      %p142 = por %p140, %p141
      %p143 = scmp.ne.s32.totalorder %s135, %s138
      %p144 = scmp.eq.s32.totalorder %s15, 0
      %p145 = por %p143, %p144
      %p146 = scmp.ne.s32.totalorder %s135, %s138
      %p147 = scmp.eq.s32.totalorder %s20, 1
      %p148 = por %p146, %p147
      %p149 = scmp.ne.s32.totalorder %s138, %s139
      %p150 = scmp.eq.s32.totalorder %s20, 0
      %p151 = por %p149, %p150
      %p152 = scmp.ne.s32.totalorder %s138, %s139
      %p153 = scmp.eq.s32.totalorder %s21, 1
      %p154 = por %p152, %p153
      %p156 = scmp.ne.s32.totalorder %s139, %s155
      %p157 = scmp.eq.s32.totalorder %s21, 0
      %p158 = por %p156, %p157
      %p159 = scmp.le.s32.totalorder 1, %s15
      %p160 = scmp.lt.s32.totalorder %s15, 3
      %p161 = pnand %p159, %p160
      %p162 = pneg %p161
      // Predicated region
      $region9: #{tpu_custom_call.1} parent=5 // pred_check
        _
      $region10: #{tpu_custom_call.1} parent=5 // pred_check_branch
        %164 = sbr.rel (%p161) target = $region12
      $region11: #{tpu_custom_call.1} parent=5 // pred_region
        %s165 = ssub.s32 %s15, 1
        // Predicated region
        $region13: #{tpu_custom_call.1} parent=11 // pred_check
          %p166 = pneg %p62
        $region14: #{tpu_custom_call.1} parent=11 // pred_check_branch
          %168 = sbr.rel (%p166) target = $region16
        $region15: #{tpu_custom_call.1} parent=11 // pred_region
          _
        $region16: #{tpu_custom_call.1} parent=11 // pred_fallthru
          _
        // Predicated region
        $region17: #{tpu_custom_call.1} parent=11 // pred_check
          %p169 = pneg %p83
        $region18: #{tpu_custom_call.1} parent=11 // pred_check_branch
          %171 = sbr.rel (%p169) target = $region20
        $region19: #{tpu_custom_call.1} parent=11 // pred_region
          _
        $region20: #{tpu_custom_call.1} parent=11 // pred_fallthru
          _
        // Predicated region
        $region21: #{tpu_custom_call.1} parent=11 // pred_check
          %p172 = pneg %p104
        $region22: #{tpu_custom_call.1} parent=11 // pred_check_branch
          %174 = sbr.rel (%p172) target = $region24
        $region23: #{tpu_custom_call.1} parent=11 // pred_region
          %s176 = ssub.s32 2048, 2048
          %177 = vsyncadd [#allocation3], %s176
          %s178 = sshll.u32 [#allocation2], 4
          %s179 = int_to_ptr.vmem [resolvable:$true] %s178
          %184 = dma.hbm_to_vmem [thread:$0]  %s3, 2048, %s179, [#allocation3], 128, 128, 8
        $region24: #{tpu_custom_call.1} parent=11 // pred_fallthru
          _
        // Predicated region
        $region25: #{tpu_custom_call.1} parent=11 // pred_check
          %p185 = pneg %p125
        $region26: #{tpu_custom_call.1} parent=11 // pred_check_branch
          %187 = sbr.rel (%p185) target = $region28
        $region27: #{tpu_custom_call.1} parent=11 // pred_region
          _
        $region28: #{tpu_custom_call.1} parent=11 // pred_fallthru
          _
      $region12: #{tpu_custom_call.1} parent=5 // pred_fallthru
        _
      %p188 = scmp.lt.s32.totalorder %s15, 2
      // Predicated region
      $region29: #{tpu_custom_call.1} parent=5 // pred_check
        %p189 = pneg %p188
      $region30: #{tpu_custom_call.1} parent=5 // pred_check_branch
        %191 = sbr.rel (%p189) target = $region32
      $region31: #{tpu_custom_call.1} parent=5 // pred_region
        // Predicated region
        $region33: #{tpu_custom_call.1} parent=31 // pred_check
          %p192 = pneg %p35
        $region34: #{tpu_custom_call.1} parent=31 // pred_check_branch
          %194 = sbr.rel (%p192) target = $region36
        $region35: #{tpu_custom_call.1} parent=31 // pred_region
          %p195 = scmp.lt.s32.totalorder %s15, 1
          %s196 = scalar_select %p195, %s15, 1
          %s197 = smul.addr %s196, 8
          %s198 = scalar_lea.vmem %s0, %s197
        $region36: #{tpu_custom_call.1} parent=31 // pred_fallthru
          _
      $region32: #{tpu_custom_call.1} parent=5 // pred_fallthru
        _
      %p199 = scmp.le.s32.totalorder 1, %s15
      %p200 = scmp.lt.s32.totalorder %s15, 3
      %p201 = pnand %p199, %p200
      %p202 = pneg %p201
      // Predicated region
      $region37: #{tpu_custom_call.1} parent=5 // pred_check
        _
      $region38: #{tpu_custom_call.1} parent=5 // pred_check_branch
        %204 = sbr.rel (%p201) target = $region40
      $region39: #{tpu_custom_call.1} parent=5 // pred_region
        %s205 = ssub.s32 %s15, 1
        // Predicated region
        $region41: #{tpu_custom_call.1} parent=39 // pred_check
          %p206 = pneg %p104
        $region42: #{tpu_custom_call.1} parent=39 // pred_check_branch
          %208 = sbr.rel (%p206) target = $region44
        $region43: #{tpu_custom_call.1} parent=39 // pred_region
          %209 = dma.done [#allocation3], 2048
        $region44: #{tpu_custom_call.1} parent=39 // pred_fallthru
          _
        %p210 = scmp.lt.s32.totalorder %s20, 1
        %s211 = scalar_select %p210, %s20, 1
        %s212 = smul.addr %s211, 8
        %s213 = scalar_lea.vmem %s0, %s212
        %p214 = pneg %p41
        %p215 = pneg %p38
        %p216 = pneg %p62
        %p217 = pneg %p59
        %p218 = pneg %p83
        %p219 = pneg %p80
        %p220 = pneg %p104
        %p221 = pneg %p101
        %p222 = pneg %p125
        %p223 = pneg %p122
        %p224 = pneg %p151
        %p225 = pneg %p148
        %s226 = sand.u32 %s138, 1
        %s227 = scalar_lea.sflag [#allocation4], %s226
        %s228 = sand.u32 %s138, 1
        %s229 = smul.addr %s228, 8
        %s230 = scalar_lea.vmem [#allocation5], %s229
        %p231 = scmp.lt.s32.totalorder %s20, 1
        %s232 = scalar_select %p231, %s20, 1
        %s233 = smul.addr %s232, 8
        %s234 = scalar_lea.vmem %s0, %s233
        %v235 = vld [vmem:[%s234] sm:$0xff]
        %v236 = vld [vmem:[%s1] sm:$0xff]
        %v237 = vld [vmem:[%s2] sm:$0x1]
        %v239 = vlaneseq
        %v240 = vshrl.u32 %v239, 7
        %v241 = vsub.s32 0, %v240
        %v242 = vrot.slane %v237, %v241
        %vm244 = vcmask 64512
        %v246 = vsel %vm244, %v235, 0
        %248 = vmatprep.subr.mxu0 0.0
        %249 = vmatpush1.msra.mxu0 %v236
        %250 = vmatprep.subr.mxu0 0.0
        %251 = vmatpush1.msra.mxu0 0.0
        %252 = vmatprep.subr.mxu0 0.0
        %253 = vmatpush1.msra.mxu0 0.0
        %254 = vmatprep.subr.mxu0 0.0
        %255 = vmatpush1.msra.mxu0 0.0
        %256 = vmatprep.subr.mxu0 0.0
        %257 = vmatpush1.msra.mxu0 0.0
        %258 = vmatprep.subr.mxu0 0.0
        %259 = vmatpush1.msra.mxu0 0.0
        %260 = vmatprep.subr.mxu0 0.0
        %261 = vmatpush1.msra.mxu0 0.0
        %262 = vmatprep.subr.mxu0 0.0
        %263 = vmatpush1.msra.mxu0 0.0
        %264 = vmatprep.subr.mxu0 0.0
        %265 = vmatpush1.msra.mxu0 0.0
        %266 = vmatprep.subr.mxu0 0.0
        %267 = vmatpush1.msra.mxu0 0.0
        %268 = vmatprep.subr.mxu0 0.0
        %269 = vmatpush1.msra.mxu0 0.0
        %270 = vmatprep.subr.mxu0 0.0
        %271 = vmatpush1.msra.mxu0 0.0
        %272 = vmatprep.subr.mxu0 0.0
        %273 = vmatpush1.msra.mxu0 0.0
        %274 = vmatprep.subr.mxu0 0.0
        %275 = vmatpush1.msra.mxu0 0.0
        %276 = vmatprep.subr.mxu0 0.0
        %277 = vmatpush1.msra.mxu0 0.0
        %278 = vmatprep.subr.mxu0 0.0
        %279 = vmatpush1.msra.mxu0 0.0
        %280 = vmatprep.subr.mxu0 0.0
        %281 = vmatpush1.msra.mxu0 0.0
        %282 = vmatprep.subr.mxu0 0.0
        %283 = vmatpush1.msra.mxu0 0.0
        %284 = vmatprep.subr.mxu0 0.0
        %285 = vmatpush1.msra.mxu0 0.0
        %286 = vmatprep.subr.mxu0 0.0
        %287 = vmatpush1.msra.mxu0 0.0
        %288 = vmatprep.subr.mxu0 0.0
        %289 = vmatpush1.msra.mxu0 0.0
        %290 = vmatprep.subr.mxu0 0.0
        %291 = vmatpush1.msra.mxu0 0.0
        %292 = vmatprep.subr.mxu0 0.0
        %293 = vmatpush1.msra.mxu0 0.0
        %294 = vmatprep.subr.mxu0 0.0
        %295 = vmatpush1.msra.mxu0 0.0
        %296 = vmatprep.subr.mxu0 0.0
        %297 = vmatpush1.msra.mxu0 0.0
        %298 = vmatprep.subr.mxu0 0.0
        %299 = vmatpush1.msra.mxu0 0.0
        %300 = vmatprep.subr.mxu0 0.0
        %301 = vmatpush1.msra.mxu0 0.0
        %302 = vmatprep.subr.mxu0 0.0
        %303 = vmatpush1.msra.mxu0 0.0
        %304 = vmatprep.subr.mxu0 0.0
        %305 = vmatpush1.msra.mxu0 0.0
        %306 = vmatprep.subr.mxu0 0.0
        %307 = vmatpush1.msra.mxu0 0.0
        %308 = vmatprep.subr.mxu0 0.0
        %309 = vmatpush1.msra.mxu0 0.0
        %310 = vmatprep.subr.mxu0 0.0
        %311 = vmatpush1.msra.mxu0 0.0
        %312 = vmatprep.mubr.f32.mxu0 0.0
        %313 = vmatmul.mubr.f32.gmra.mrb[0].mxu0 %v246
        %v314 = vpop.f32.mrb[0].mxu0
        %v315 = vadd.f32 %v242, %v314
        %v316 = vpop.f32.mrb[0].mxu0
        %317 = vdwg.mxu0
        %v318 = vand.u32 2147483647, %v315
        %vm319 = vcmp.le.f32.partialorder %v318, 0.7853982
        %vm320 = vcmp.lt.s32.totalorder %v315, 0
        %v321 = vand.u32 %v315, 2139095040
        %v322 = vshrl.u32 %v321, 23
        %v323 = vsub.s32 %v322, 127
        %v324 = vand.u32 2147483647, %v315
        %v325 = vand.u32 %v324, 8388607
        %v326 = vor.u32 %v325, 8388608
        %v327 = vsub.s32 0, %v326
        %v328 = vadd.s32 %v323, 1
        %vm329 = vcmp.gt.s32.totalorder %v328, 0
        %v330 = vsel %vm329, %v328, 0
        %v331 = vshrl.u32 %v330, 5
        %v332 = vand.u32 %v330, 31
        %v333 = vsub.s32 32, %v332
        %v334 = vshrl.u32 683565275, %v333
        %v335 = vshll.u32 683565275, %v332
        %v336 = vshrl.u32 2475754826, %v333
        %v337 = vor.u32 %v335, %v336
        %v338 = vshll.u32 2475754826, %v332
        %v339 = vshrl.u32 2131351028, %v333
        %v340 = vor.u32 %v338, %v339
        %v341 = vshll.u32 2131351028, %v332
        %v342 = vshrl.u32 2102212464, %v333
        %v343 = vor.u32 %v341, %v342
        %v344 = vshll.u32 2102212464, %v332
        %v345 = vshrl.u32 920167782, %v333
        %v346 = vor.u32 %v344, %v345
        %v347 = vshll.u32 920167782, %v332
        %v348 = vshrl.u32 1326507024, %v333
        %v349 = vor.u32 %v347, %v348
        %vm350 = vcmp.lt.s32.totalorder %v331, 1
        %vm351 = vcmp.lt.s32.totalorder %v331, 2
        %vm352 = vcmp.lt.s32.totalorder %v331, 3
        %vm353 = vcmp.lt.s32.totalorder %v331, 4
        %v354 = vsel %vm350, %v334, %v337
        %v355 = vsel %vm353, %v343, 2102212464
        %v356 = vsel %vm352, %v340, %v355
        %v357 = vsel %vm351, %v354, %v356
        %v358 = vsel %vm350, %v337, %v340
        %v359 = vsel %vm353, %v346, 920167782
        %v360 = vsel %vm352, %v343, %v359
        %v361 = vsel %vm351, %v358, %v360
        %v362 = vsel %vm350, %v340, %v343
        %v363 = vsel %vm353, %v349, 1326507024
        %v364 = vsel %vm352, %v346, %v363
        %v365 = vsel %vm351, %v362, %v364
        %v366 = vshll.u32 %v326, 8
        %v367 = vmul.u32.u64.compose %v366, %v365
        %v368 = vextract.low.u32 %v367
        %v369 = vextract.high.u32 %v367
        %v370 = vmul.u32.u64.compose %v366, %v361
        %v371 = vextract.low.u32 %v370
        %v372 = vextract.high.u32 %v370
        %v373 = vmul.u32 %v366, %v357
        %v374 = vadd.s32 %v369, %v371
        %vm375 = vc.u32 %v369, %v371
        %v376 = vadd.s32 %v372, 1
        %v377 = vsel %vm375, %v376, %v372
        %v378 = vadd.s32 %v373, %v377
        %v379 = vadd.s32 %v378, 536870912
        %v380 = vshrl.u32 %v379, 30
        %v381 = vshll.u32 %v380, 30
        %v382 = vsub.s32 %v378, %v381
        %vm383 = vcmp.lt.s32.totalorder %v382, 0
        %v384 = vsub.s32 0, %v382
        %v385 = vsel %vm383, %v384, %v382
        %v386 = vclz %v385
        %v387 = vsub.s32 %v386, 2
        %vm388 = vcmp.gt.s32.totalorder 0, %v387
        %v389 = vsel %vm388, 0, %v387
        %v390 = vsub.s32 32, %v389
        %v391 = vshll.u32 %v382, %v389
        %v392 = vshrl.u32 %v374, %v390
        %v393 = vor.u32 %v391, %v392
        %v394 = vsub.s32 4294967266, %v389
        %v395 = vadd.s32 %v394, 127
        %v396 = vshll.u32 %v395, 23
        %v397 = vor.u32 4788187, %v396
        %v398 = vand.u32 2147483647, %v397
        %v400 = vcvt.s32.f32 %v393
        %v401 = vmul.f32 %v400, %v398
        %v402 = vxor.u32 %v401, 2147483648
        %v403 = vsel %vm320, %v402, %v401
        %v404 = vsub.s32 4, %v380
        %v405 = vsel %vm320, %v404, %v380
        %v406 = vsel %vm319, %v315, %v403
        %v407 = vsel %vm319, 0, %v405
        %v408 = vcosq.f32.pop %v406
        %v409 = vsinq.f32.pop %v406
        %vm410 = vweird.f32 %v315
        %v411 = vadd.s32 %v407, 3
        %v412 = vand.u32 %v411, 3
        %vm413 = vcmp.lt.s32.totalorder %v412, 2
        %vm414 = vcmp.eq.s32.totalorder %v412, 0
        %v415 = vxor.u32 %v409, 2147483648
        %v416 = vsel %vm414, %v408, %v415
        %vm417 = vcmp.eq.s32.totalorder %v412, 2
        %v418 = vxor.u32 %v408, 2147483648
        %v419 = vsel %vm417, %v418, %v409
        %v420 = vsel %vm413, %v416, %v419
        %v421 = vsel %vm410, nan, %v420
        %v422 = vld [vmem:[#allocation2] sm:$0xff]
        %v423 = vld [vmem:[#allocation2 + $0x8] sm:$0xff]
        %v424 = vld [vmem:[#allocation2 + $0x10] sm:$0xff]
        %v425 = vld [vmem:[#allocation2 + $0x18] sm:$0xff]
        %v426 = vld [vmem:[#allocation2 + $0x20] sm:$0xff]
        %v427 = vld [vmem:[#allocation2 + $0x28] sm:$0xff]
        %v428 = vld [vmem:[#allocation2 + $0x30] sm:$0xff]
        %v429 = vld [vmem:[#allocation2 + $0x38] sm:$0xff]
        %v430 = vld [vmem:[#allocation2 + $0x40] sm:$0xff]
        %v431 = vld [vmem:[#allocation2 + $0x48] sm:$0xff]
        %v432 = vld [vmem:[#allocation2 + $0x50] sm:$0xff]
        %v433 = vld [vmem:[#allocation2 + $0x58] sm:$0xff]
        %v434 = vld [vmem:[#allocation2 + $0x60] sm:$0xff]
        %v435 = vld [vmem:[#allocation2 + $0x68] sm:$0xff]
        %v436 = vld [vmem:[#allocation2 + $0x70] sm:$0xff]
        %v437 = vld [vmem:[#allocation2 + $0x78] sm:$0xff]
        %v438 = vld [vmem:[%s4] sm:$0x1]
        %v440 = vlaneseq
        %v441 = vshrl.u32 %v440, 7
        %v442 = vsub.s32 0, %v441
        %v443 = vrot.slane %v438, %v442
        %445 = vmatprep.subr.mxu0 0.0
        %446 = vmatpush1.msra.mxu0 %v422
        %447 = vmatprep.subr.mxu0 0.0
        %448 = vmatpush1.msra.mxu0 %v423
        %449 = vmatprep.subr.mxu0 0.0
        %450 = vmatpush1.msra.mxu0 %v424
        %451 = vmatprep.subr.mxu0 0.0
        %452 = vmatpush1.msra.mxu0 %v425
        %453 = vmatprep.subr.mxu0 0.0
        %454 = vmatpush1.msra.mxu0 %v426
        %455 = vmatprep.subr.mxu0 0.0
        %456 = vmatpush1.msra.mxu0 %v427
        %457 = vmatprep.subr.mxu0 0.0
        %458 = vmatpush1.msra.mxu0 %v428
        %459 = vmatprep.subr.mxu0 0.0
        %460 = vmatpush1.msra.mxu0 %v429
        %461 = vmatprep.subr.mxu0 0.0
        %462 = vmatpush1.msra.mxu0 %v430
        %463 = vmatprep.subr.mxu0 0.0
        %464 = vmatpush1.msra.mxu0 %v431
        %465 = vmatprep.subr.mxu0 0.0
        %466 = vmatpush1.msra.mxu0 %v432
        %467 = vmatprep.subr.mxu0 0.0
        %468 = vmatpush1.msra.mxu0 %v433
        %469 = vmatprep.subr.mxu0 0.0
        %470 = vmatpush1.msra.mxu0 %v434
        %471 = vmatprep.subr.mxu0 0.0
        %472 = vmatpush1.msra.mxu0 %v435
        %473 = vmatprep.subr.mxu0 0.0
        %474 = vmatpush1.msra.mxu0 %v436
        %475 = vmatprep.subr.mxu0 0.0
        %476 = vmatpush1.msra.mxu0 %v437
        %477 = vmatprep.subr.mxu0 0.0
        %478 = vmatpush1.msra.mxu0 0.0
        %479 = vmatprep.subr.mxu0 0.0
        %480 = vmatpush1.msra.mxu0 0.0
        %481 = vmatprep.subr.mxu0 0.0
        %482 = vmatpush1.msra.mxu0 0.0
        %483 = vmatprep.subr.mxu0 0.0
        %484 = vmatpush1.msra.mxu0 0.0
        %485 = vmatprep.subr.mxu0 0.0
        %486 = vmatpush1.msra.mxu0 0.0
        %487 = vmatprep.subr.mxu0 0.0
        %488 = vmatpush1.msra.mxu0 0.0
        %489 = vmatprep.subr.mxu0 0.0
        %490 = vmatpush1.msra.mxu0 0.0
        %491 = vmatprep.subr.mxu0 0.0
        %492 = vmatpush1.msra.mxu0 0.0
        %493 = vmatprep.subr.mxu0 0.0
        %494 = vmatpush1.msra.mxu0 0.0
        %495 = vmatprep.subr.mxu0 0.0
        %496 = vmatpush1.msra.mxu0 0.0
        %497 = vmatprep.subr.mxu0 0.0
        %498 = vmatpush1.msra.mxu0 0.0
        %499 = vmatprep.subr.mxu0 0.0
        %500 = vmatpush1.msra.mxu0 0.0
        %501 = vmatprep.subr.mxu0 0.0
        %502 = vmatpush1.msra.mxu0 0.0
        %503 = vmatprep.subr.mxu0 0.0
        %504 = vmatpush1.msra.mxu0 0.0
        %505 = vmatprep.subr.mxu0 0.0
        %506 = vmatpush1.msra.mxu0 0.0
        %507 = vmatprep.subr.mxu0 0.0
        %508 = vmatpush1.msra.mxu0 0.0
        %509 = vmatprep.mubr.f32.mxu0 0.0
        %510 = vmatmul.mubr.f32.gmra.mrb[0].mxu0 %v421
        %v511 = vpop.f32.mrb[0].mxu0
        %v512 = vadd.f32 %v443, %v511
        %v513 = vpop.f32.mrb[0].mxu0
        %514 = vdwg.mxu0
        %515 = vst [vmem:[%s230] sm:$0xff] %v512
        %s516 = sand.u32 %s138, 1
        %s517 = scalar_lea.sflag [#allocation4], %s516
        %s518 = sand.u32 %s138, 1
        %s519 = smul.addr %s518, 8
        %s520 = scalar_lea.vmem [#allocation5], %s519
        // Predicated region
        $region45: #{tpu_custom_call.1} parent=39 // pred_check
          %p521 = pneg %p148
        $region46: #{tpu_custom_call.1} parent=39 // pred_check_branch
          %523 = sbr.rel (%p521) target = $region48
        $region47: #{tpu_custom_call.1} parent=39 // pred_region
          %s525 = ssub.s32 128, 128
          %526 = vsyncadd %s517, %s525
          %s527 = smul.addr %s20, 128
          %s528 = scalar_lea.hbm %s5, %s527
          %s530 = sshll.u32 %s520, 4
          %s531 = int_to_ptr.vmem [resolvable:$true] %s530
          %533 = dma.vmem_to_hbm [thread:$0]  %s531, 128, %s528, %s517
        $region48: #{tpu_custom_call.1} parent=39 // pred_fallthru
          _
      $region40: #{tpu_custom_call.1} parent=5 // pred_fallthru
        _
      %p534 = scmp.le.s32.totalorder 2, %s15
      // Predicated region
      $region49: #{tpu_custom_call.1} parent=5 // pred_check
        %p535 = pneg %p534
      $region50: #{tpu_custom_call.1} parent=5 // pred_check_branch
        %537 = sbr.rel (%p535) target = $region52
      $region51: #{tpu_custom_call.1} parent=5 // pred_region
        %s538 = ssub.s32 %s15, 2
        // Predicated region
        $region53: #{tpu_custom_call.1} parent=51 // pred_check
          %p539 = pneg %p154
        $region54: #{tpu_custom_call.1} parent=51 // pred_check_branch
          %541 = sbr.rel (%p539) target = $region56
        $region55: #{tpu_custom_call.1} parent=51 // pred_region
          %s542 = sand.u32 %s139, 1
          %s543 = scalar_lea.sflag [#allocation4], %s542
          %s544 = sand.u32 %s139, 1
          %s545 = smul.addr %s544, 8
          %s546 = scalar_lea.vmem [#allocation5], %s545
          %547 = dma.done %s543, 128
        $region56: #{tpu_custom_call.1} parent=51 // pred_fallthru
          _
      $region52: #{tpu_custom_call.1} parent=5 // pred_fallthru
        _
    $region6: #{tpu_custom_call.1} parent=1 // loop_footer
      %s19 = sadd.s32 1, %s15
    $region7: #{tpu_custom_call.1} parent=1 // loop_footer_branch
      %14 = sbr.rel target = $region3
    $region8: #{tpu_custom_call.1} parent=1 // loop_exit
      _
    %548 = vsyncpa [#allocation3], 1
    %s549 = scalar_lea.sflag [#allocation3], 1
    %550 = vsyncpa %s549, 1
    %551 = vsyncpa [#allocation4], 1
    %s552 = scalar_lea.sflag [#allocation4], 1
    %553 = vsyncpa %s552, 1

</llo_original>
